<compile_context>
chip_gen: v6e
topology: v6e:2x2x1
jax: 0.10.0
libtpu: 0.0.40
codegen_flags: <defaults>
</compile_context>

<pallas_src>
import math
import functools
from collections import namedtuple

import jax
import jax.numpy as jnp
from jax.experimental import pallas as pl
from jax.experimental.pallas import tpu as pltpu

_SUBLANE = 8


def _round_up(x, m):
    return ((x + m - 1) // m) * m


def _vmem_budget_bytes():
    """Generation-aware VMEM budget (headroom left for compiler scratch/semaphores)."""
    try:
        cap = int(pltpu.get_tpu_info().vmem_capacity_bytes)  # 128 MiB v5e/v6e, 64 MiB v7x
    except Exception:
        cap = 64 * 2**20                                     # conservative fallback (v7x)
    return max(cap - 12 * 2**20, 16 * 2**20)


def _estimate_vmem_bytes(block_b, cin, cout, tsize):
    """Conservative per-batch-block VMEM working set (2x buffering on pipelined blocks)."""
    weights = (cin * cout + cout * tsize) * 2 + (cout + tsize) * 4      # resident, 1 copy
    x_blk = block_b * cin * 4 * 2                                       # x[t] tile
    state = 4 * block_b * cin * 4 * 2                                   # eps0/eps1 in+out
    step_out = block_b * (2 * cout * 2 + tsize * 2 + cout * 4) * 2      # spikes,pv,pvout bf16; vmem f32
    temps = 6 * block_b * max(cin, cout, tsize) * 4
    return weights + x_blk + state + step_out + temps


def _dcll_seq_kernel(alpha, alphas, tau_m_dt, tau_s_dt, matmul_dtype,
                     x_ref, eps0_in_ref, eps1_in_ref,
                     w1_ref, b1_ref, w2_ref, b2_ref,
                     out_ref, pvout_ref, pv_ref, vmem_ref,
                     eps0_ref, eps1_ref):
    t = pl.program_id(1)

    # Load the initial recurrent state once per batch block; eps0_ref/eps1_ref
    # are output blocks whose index ignores t, so they stay resident in VMEM
    # across the whole time loop (accumulator pattern).
    @pl.when(t == 0)
    def _():
        eps0_ref[...] = eps0_in_ref[...]
        eps1_ref[...] = eps1_in_ref[...]

    x = x_ref[0]                                       # (block_b, cin) f32

    # State update: pure f32 elementwise (VPU).
    eps0 = x * tau_s_dt + alphas * eps0_ref[...]
    eps1 = alpha * eps1_ref[...] + eps0 * tau_m_dt

    # vmem = F.linear(eps1, W1, b1): bf16 operands on the MXU, f32 accumulate.
    # TODO(synk): if bit-parity of the spike threshold vs an f32 reference is
    # required, run this matmul with f32 operands instead of bf16.
    vmem = jnp.dot(eps1.astype(matmul_dtype), w1_ref[...],
                   preferred_element_type=jnp.float32) + b1_ref[...]

    pv = jax.nn.sigmoid(vmem)                          # EUP
    spikes = (vmem > 0.0).astype(out_ref.dtype)        # VPU, spiking=True

    # pvoutput = i2o(pv) = pv @ W2^T + b2 (lc_dropout=False).
    pvout = jnp.dot(pv.astype(matmul_dtype), w2_ref[...],
                    preferred_element_type=jnp.float32) + b2_ref[...]

    out_ref[0] = spikes
    pvout_ref[0] = pvout.astype(pvout_ref.dtype)
    pv_ref[0] = pv.astype(pv_ref.dtype)
    vmem_ref[0] = vmem
    eps0_ref[...] = eps0
    eps1_ref[...] = eps1


DCLLParams = namedtuple(
    "DCLLParams", ["w1_t", "b1", "w2_t", "b2", "cin", "cout", "tsize"])


def prepare_params(w1, b1, w2, b2, matmul_dtype=jnp.bfloat16):
    """One-time parameter prep: transpose + cast.  No HBM padding (kept at true widths).

    w1: [Cout, Cin] (CLLDenseModule.weight),  b1: [Cout]
    w2: [T, Cout]   (i2o.weight),             b2: [T]
    """
    cout, cin = w1.shape
    tsize = w2.shape[0]
    # TODO(synk): for genuinely large Cin/Cout, pad/tile the matmul K/N dims to
    # 256 (v6e/v7x MXU) with a K-tiled accumulator; unnecessary at these sizes.
    w1_t = jnp.asarray(w1, jnp.float32).T.astype(matmul_dtype)          # [Cin, Cout]
    w2_t = jnp.asarray(w2, jnp.float32).T.astype(matmul_dtype)          # [Cout, T]
    b1_row = jnp.asarray(b1, jnp.float32).reshape(1, cout)
    b2_row = jnp.asarray(b2, jnp.float32).reshape(1, tsize)
    return DCLLParams(w1_t, b1_row, w2_t, b2_row, cin, cout, tsize)


def dense_dcll_forward_sequence(x_seq, eps0, eps1, params, alpha=0.9, alphas=0.85):
    """Fused DenseDCLLlayer forward over a whole sequence.

    x_seq: [T, B, Cin] f32 (each x_seq[t] is one flattened module input).
    eps0, eps1: [B, Cin] f32 initial recurrent state.
    Returns (output[T,B,Cout] bf16, pvoutput[T,B,target] bf16, pv[T,B,Cout] bf16,
             vmem[T,B,Cout] f32, eps0_final[B,Cin] f32, eps1_final[B,Cin] f32).
    """
    T, B, cin = x_seq.shape
    assert cin == params.cin
    cout, tsize = params.cout, params.tsize
    matmul_dtype = params.w1_t.dtype
    budget = _vmem_budget_bytes()

    # ---- batch tiling -------------------------------------------------------
    if B < 128:
        block_b = _round_up(B, _SUBLANE)                # single block; T axis pipelines
    elif B <= 1024:
        block_b = _round_up(-(-B // 2), _SUBLANE)       # >=2 blocks: both v7x TCs busy
    else:
        block_b = 512
    while block_b > 64 and _estimate_vmem_bytes(block_b, cin, cout, tsize) > budget:
        block_b = max(64, _round_up(block_b // 2, _SUBLANE))

    B_pad = _round_up(B, block_b)
    grid = (B_pad // block_b, T)

    # One-time pad of the whole sequence (not per timestep); skipped when aligned.
    if B_pad != B:
        row_pad = ((0, B_pad - B), (0, 0))
        x_seq_p = jnp.pad(x_seq, ((0, 0),) + row_pad)
        eps0_p = jnp.pad(eps0, row_pad)
        eps1_p = jnp.pad(eps1, row_pad)
    else:
        x_seq_p, eps0_p, eps1_p = x_seq, eps0, eps1

    kernel = functools.partial(
        _dcll_seq_kernel, alpha, alphas,
        1.0 / (1.0 - alpha), 1.0 / (1.0 - alphas), matmul_dtype)

    # Constant operands: whole array resident in VMEM, single copy.
    resident = pl.BlockSpec(memory_space=pltpu.MemorySpace.VMEM)

    def seq_spec(width):                                 # per-timestep blocks
        return pl.BlockSpec((1, block_b, width), lambda i, t: (t, i, 0))

    def state_spec():                                    # time-invariant (resident) blocks
        return pl.BlockSpec((block_b, cin), lambda i, t: (i, 0))

    out_shape = (
        jax.ShapeDtypeStruct((T, B_pad, cout), jnp.bfloat16),   # output (spikes)
        jax.ShapeDtypeStruct((T, B_pad, tsize), jnp.bfloat16),  # pvoutput
        jax.ShapeDtypeStruct((T, B_pad, cout), jnp.bfloat16),   # pv
        jax.ShapeDtypeStruct((T, B_pad, cout), jnp.float32),    # vmem (pvmem)
        jax.ShapeDtypeStruct((B_pad, cin), jnp.float32),        # eps0 final
        jax.ShapeDtypeStruct((B_pad, cin), jnp.float32),        # eps1 final
    )

    bytes_in = ((x_seq_p.size + eps0_p.size + eps1_p.size) * 4
                + params.w1_t.size * 2 + params.w2_t.size * 2
                + (params.b1.size + params.b2.size) * 4)
    bytes_out = sum(math.prod(s.shape) * jnp.dtype(s.dtype).itemsize for s in out_shape)
    cost = pl.CostEstimate(
        flops=2 * T * B_pad * (cin * cout + cout * tsize),
        transcendentals=T * B_pad * cout,
        bytes_accessed=bytes_in + bytes_out)

    vmem_limit = int(min(
        budget,
        max(_estimate_vmem_bytes(block_b, cin, cout, tsize) * 5 // 4, 32 * 2**20)))

    outs = pl.pallas_call(
        kernel,
        out_shape=out_shape,
        grid_spec=pltpu.PrefetchScalarGridSpec(
            num_scalar_prefetch=0,
            grid=grid,
            in_specs=[
                seq_spec(cin),     # x[t]
                state_spec(),      # eps0 initial
                state_spec(),      # eps1 initial
                resident,          # W1^T (bf16)
                resident,          # b1
                resident,          # W2^T (bf16)
                resident,          # b2
            ],
            out_specs=[
                seq_spec(cout),    # output (spikes, bf16)
                seq_spec(tsize),   # pvoutput (bf16)
                seq_spec(cout),    # pv (bf16)
                seq_spec(cout),    # vmem (f32)
                state_spec(),      # eps0 final (VMEM-resident across t)
                state_spec(),      # eps1 final
            ],
        ),
        # State may reuse its input HBM buffers (donate at jit level for true in-place).
        input_output_aliases={1: 4, 2: 5},
        compiler_params=pltpu.CompilerParams(
            dimension_semantics=("parallel", "arbitrary"),
            vmem_limit_bytes=vmem_limit),
        cost_estimate=cost,
    )(x_seq_p, eps0_p, eps1_p, params.w1_t, params.b1, params.w2_t, params.b2)

    out, pvout, pv, vmem, e0, e1 = outs
    if B_pad != B:          # slice once at the end, not per timestep
        out, pvout, pv, vmem = out[:, :B], pvout[:, :B], pv[:, :B], vmem[:, :B]
        e0, e1 = e0[:B], e1[:B]
    return out, pvout, pv, vmem, e0, e1


def dense_dcll_forward(x, eps0, eps1, params, alpha=0.9, alphas=0.85):
    """Single-timestep forward (module-call parity): x is [B, Cin]."""
    out, pvout, pv, vmem, e0, e1 = dense_dcll_forward_sequence(
        x[None], eps0, eps1, params, alpha=alpha, alphas=alphas)
    return out[0], pvout[0], pv[0], vmem[0], e0, e1


def init_params(key, in_channels, out_channels, target_size, lc_ampl=0.5):
    """Deterministic parameter init mirroring the PyTorch module's __init__."""
    k1, k2, k3, k4 = jax.random.split(key, 4)
    stdv = 1.0 / math.sqrt(in_channels)
    w1 = jax.random.uniform(k1, (out_channels, in_channels), jnp.float32,
                            minval=-stdv * 0.01, maxval=stdv * 0.01)
    b1 = jax.random.uniform(k2, (out_channels,), jnp.float32, minval=-stdv, maxval=stdv)
    stdv2 = lc_ampl / math.sqrt(out_channels)
    w2 = jax.random.uniform(k3, (target_size, out_channels), jnp.float32,
                            minval=-stdv2, maxval=stdv2)
    b2 = jax.random.uniform(k4, (target_size,), jnp.float32, minval=-stdv2, maxval=stdv2)
    return w1, b1, w2, b2


def _reference_sequence(x_seq, eps0, eps1, w1, b1, w2, b2, alpha=0.9, alphas=0.85):
    """Pure-JAX f32 reference: the PyTorch module forward applied per timestep."""
    tau_m_dt = 1.0 / (1.0 - alpha)
    tau_s_dt = 1.0 / (1.0 - alphas)
    outs, pvouts, pvs, vmems = [], [], [], []
    e0, e1 = eps0, eps1
    for t in range(x_seq.shape[0]):
        e0 = x_seq[t] * tau_s_dt + alphas * e0
        e1 = alpha * e1 + e0 * tau_m_dt
        vmem = e1 @ w1.T + b1
        pv = jax.nn.sigmoid(vmem)
        out = (vmem > 0).astype(jnp.float32)
        pvout = pv @ w2.T + b2
        outs.append(out); pvouts.append(pvout); pvs.append(pv); vmems.append(vmem)
    return (jnp.stack(outs), jnp.stack(pvouts), jnp.stack(pvs), jnp.stack(vmems), e0, e1)


if __name__ == "__main__":
    # Small shapes consistent with DenseDCLLlayer (input viewed as [-1, Cin]).
    T = 8
    batch = 16
    in_channels = 32
    out_channels = 48
    target_size = 10
    alpha, alphas = 0.9, 0.85

    key = jax.random.PRNGKey(0)
    kx, ke0, ke1, kp = jax.random.split(key, 4)

    # Spike sequence [T, B, Cin]; state perturbed so the recurrence matters.
    x_seq = (jax.random.uniform(kx, (T, batch, in_channels)) < 0.3).astype(jnp.float32)
    eps0 = 0.1 * jax.random.normal(ke0, (batch, in_channels), jnp.float32)
    eps1 = 0.1 * jax.random.normal(ke1, (batch, in_channels), jnp.float32)

    w1, b1, w2, b2 = init_params(kp, in_channels, out_channels, target_size)

    # f32 reference (computed up-front; kernel may alias the state buffers).
    ref = jax.block_until_ready(_reference_sequence(
        x_seq, eps0, eps1, w1, b1, w2, b2, alpha=alpha, alphas=alphas))

    params = prepare_params(w1, b1, w2, b2, matmul_dtype=jnp.bfloat16)

    outs = dense_dcll_forward_sequence(x_seq, eps0, eps1, params,
                                       alpha=alpha, alphas=alphas)
    outs = jax.block_until_ready(outs)

    out_k, pvout_k, pv_k, vmem_k, e0_k, e1_k = outs
    out_r, pvout_r, pv_r, vmem_r, e0_r, e1_r = ref

    assert out_k.shape == out_r.shape and pvout_k.shape == pvout_r.shape
    assert pv_k.shape == pv_r.shape and vmem_k.shape == vmem_r.shape
    assert e0_k.shape == e0_r.shape and e1_k.shape == e1_r.shape

    # Recurrent state runs fully in f32 -> tight tolerance.
    assert jnp.allclose(e0_k, e0_r, atol=1e-3, rtol=1e-4)
    assert jnp.allclose(e1_k, e1_r, atol=1e-3, rtol=1e-4)
    # Matmul operands are bf16 on the MXU (f32 accumulate); pv/pvout stored bf16.
    assert jnp.allclose(vmem_k, vmem_r, atol=2.5e-1, rtol=5e-2)
    assert jnp.allclose(pv_k.astype(jnp.float32), pv_r, atol=1e-1, rtol=5e-2)
    assert jnp.allclose(pvout_k.astype(jnp.float32), pvout_r, atol=1e-1, rtol=5e-2)
    # Spikes: exactly the threshold of the kernel's own vmem; agree with the f32
    # reference away from the decision boundary.
    assert jnp.array_equal(out_k.astype(jnp.float32),
                           (vmem_k > 0).astype(jnp.float32))
    far = jnp.abs(vmem_r) > 2.5e-1
    assert bool(jnp.all(jnp.where(far, out_k.astype(jnp.float32) == out_r, True)))

    print("KERNEL_OK")
</pallas_src>

<mosaic_0001>
module attributes {stable_mosaic.version = 11 : i64} {
  func.func @_dcll_seq_kernel(%arg0: i32, %arg1: i32, %arg2: memref<1x16x32xf32, #tpu.memory_space<vmem>>, %arg3: memref<16x32xf32, #tpu.memory_space<vmem>>, %arg4: memref<16x32xf32, #tpu.memory_space<vmem>>, %arg5: memref<32x48xbf16, #tpu.memory_space<vmem>>, %arg6: memref<1x48xf32, #tpu.memory_space<vmem>>, %arg7: memref<48x10xbf16, #tpu.memory_space<vmem>>, %arg8: memref<1x10xf32, #tpu.memory_space<vmem>>, %arg9: memref<1x16x48xbf16, #tpu.memory_space<vmem>>, %arg10: memref<1x16x10xbf16, #tpu.memory_space<vmem>>, %arg11: memref<1x16x48xbf16, #tpu.memory_space<vmem>>, %arg12: memref<1x16x48xf32, #tpu.memory_space<vmem>>, %arg13: memref<16x32xf32, #tpu.memory_space<vmem>>, %arg14: memref<16x32xf32, #tpu.memory_space<vmem>>) attributes {dimension_semantics = [#tpu.dimension_semantics<parallel>, #tpu.dimension_semantics<arbitrary>], iteration_bounds = array<i64: 1, 8>, scalar_prefetch = 0 : i64, scratch_operands = 0 : i64, tpu.core_type = #tpu.core_type<tc>, window_params = [{transform_indices = @transform_0, window_bounds = array<i64: 1, 16, 32>}, {transform_indices = @transform_1, window_bounds = array<i64: 16, 32>}, {transform_indices = @transform_2, window_bounds = array<i64: 16, 32>}, {pipeline_mode = #tpu.pipeline_mode<synchronous>, transform_indices = @transform_3, window_bounds = array<i64: 32, 48>}, {pipeline_mode = #tpu.pipeline_mode<synchronous>, transform_indices = @transform_4, window_bounds = array<i64: 1, 48>}, {pipeline_mode = #tpu.pipeline_mode<synchronous>, transform_indices = @transform_5, window_bounds = array<i64: 48, 10>}, {pipeline_mode = #tpu.pipeline_mode<synchronous>, transform_indices = @transform_6, window_bounds = array<i64: 1, 10>}, {transform_indices = @transform_7, window_bounds = array<i64: 1, 16, 48>}, {transform_indices = @transform_8, window_bounds = array<i64: 1, 16, 10>}, {transform_indices = @transform_9, window_bounds = array<i64: 1, 16, 48>}, {transform_indices = @transform_10, window_bounds = array<i64: 1, 16, 48>}, {transform_indices = @transform_11, window_bounds = array<i64: 16, 32>}, {transform_indices = @transform_12, window_bounds = array<i64: 16, 32>}]} {
    %c0_i32 = arith.constant 0 : i32
    %0 = arith.cmpi eq, %arg1, %c0_i32 : i32
    %1 = arith.extui %0 : i1 to i32
    %c0_i32_0 = arith.constant 0 : i32
    %2 = arith.cmpi ne, %1, %c0_i32_0 : i32
    scf.if %2 {
      %c0_38 = arith.constant 0 : index
      %c0_39 = arith.constant 0 : index
      %55 = vector.load %arg3[%c0_38, %c0_39] : memref<16x32xf32, #tpu.memory_space<vmem>>, vector<16x32xf32>
      %c0_40 = arith.constant 0 : index
      %c0_41 = arith.constant 0 : index
      %56 = vector.load %arg13[%c0_40, %c0_41] : memref<16x32xf32, #tpu.memory_space<vmem>>, vector<16x32xf32>
      tpu.vector_store %arg13[%c0_40, %c0_41], %55 {strides = array<i32>} : memref<16x32xf32, #tpu.memory_space<vmem>>, vector<16x32xf32>,
      %c0_42 = arith.constant 0 : index
      %c0_43 = arith.constant 0 : index
      %57 = vector.load %arg4[%c0_42, %c0_43] : memref<16x32xf32, #tpu.memory_space<vmem>>, vector<16x32xf32>
      %c0_44 = arith.constant 0 : index
      %c0_45 = arith.constant 0 : index
      %58 = vector.load %arg14[%c0_44, %c0_45] : memref<16x32xf32, #tpu.memory_space<vmem>>, vector<16x32xf32>
      tpu.vector_store %arg14[%c0_44, %c0_45], %57 {strides = array<i32>} : memref<16x32xf32, #tpu.memory_space<vmem>>, vector<16x32xf32>,
    } else {
    }
    %c0 = arith.constant 0 : index
    %c0_1 = arith.constant 0 : index
    %c0_2 = arith.constant 0 : index
    %3 = vector.load %arg2[%c0, %c0_1, %c0_2] : memref<1x16x32xf32, #tpu.memory_space<vmem>>, vector<1x16x32xf32>
    %4 = vector.shape_cast %3 : vector<1x16x32xf32> to vector<16x32xf32>
    %cst = arith.constant 6.66666651 : f32
    %5 = vector.broadcast %cst : f32 to vector<16x32xf32>
    %6 = arith.mulf %4, %5 : vector<16x32xf32>
    %c0_3 = arith.constant 0 : index
    %c0_4 = arith.constant 0 : index
    %7 = vector.load %arg13[%c0_3, %c0_4] : memref<16x32xf32, #tpu.memory_space<vmem>>, vector<16x32xf32>
    %cst_5 = arith.constant 8.500000e-01 : f32
    %8 = vector.broadcast %cst_5 : f32 to vector<16x32xf32>
    %9 = arith.mulf %8, %7 : vector<16x32xf32>
    %10 = arith.addf %6, %9 : vector<16x32xf32>
    %c0_6 = arith.constant 0 : index
    %c0_7 = arith.constant 0 : index
    %11 = vector.load %arg14[%c0_6, %c0_7] : memref<16x32xf32, #tpu.memory_space<vmem>>, vector<16x32xf32>
    %cst_8 = arith.constant 0.899999976 : f32
    %12 = vector.broadcast %cst_8 : f32 to vector<16x32xf32>
    %13 = arith.mulf %12, %11 : vector<16x32xf32>
    %cst_9 = arith.constant 1.000000e+01 : f32
    %14 = vector.broadcast %cst_9 : f32 to vector<16x32xf32>
    %15 = arith.mulf %10, %14 : vector<16x32xf32>
    %16 = arith.addf %13, %15 : vector<16x32xf32>
    %17 = arith.truncf %16 : vector<16x32xf32> to vector<16x32xbf16>
    %c0_10 = arith.constant 0 : index
    %c0_11 = arith.constant 0 : index
    %18 = vector.load %arg5[%c0_10, %c0_11] : memref<32x48xbf16, #tpu.memory_space<vmem>>, vector<32x48xbf16>
    %cst_12 = arith.constant dense<0.000000e+00> : vector<16x48xf32>
    %19 = tpu.matmul %17, %18, %cst_12 {dimension_numbers = #tpu.dot_dimension_numbers<[1], [0], [0], [1], [0, 0, 1, 1], [], []>} : vector<16x32xbf16>, vector<32x48xbf16>, vector<16x48xf32> -> vector<16x48xf32>
    %c0_13 = arith.constant 0 : index
    %c0_14 = arith.constant 0 : index
    %20 = vector.load %arg6[%c0_13, %c0_14] : memref<1x48xf32, #tpu.memory_space<vmem>>, vector<1x48xf32>
    %21 = vector.broadcast %20 : vector<1x48xf32> to vector<16x48xf32>
    %22 = arith.addf %19, %21 : vector<16x48xf32>
    %23 = arith.negf %22 : vector<16x48xf32>
    %24 = math.exp %23 : vector<16x48xf32>
    %cst_15 = arith.constant 1.000000e+00 : f32
    %25 = vector.broadcast %cst_15 : f32 to vector<16x48xf32>
    %26 = arith.addf %25, %24 : vector<16x48xf32>
    %27 = arith.divf %25, %26 : vector<16x48xf32>
    %cst_16 = arith.constant 0.000000e+00 : f32
    %28 = vector.broadcast %cst_16 : f32 to vector<16x48xf32>
    %29 = arith.cmpf ogt, %22, %28 : vector<16x48xf32>
    %30 = arith.extui %29 : vector<16x48xi1> to vector<16x48xi32>
    %31 = arith.sitofp %30 : vector<16x48xi32> to vector<16x48xf32>
    %32 = arith.truncf %31 : vector<16x48xf32> to vector<16x48xbf16>
    %33 = arith.truncf %27 : vector<16x48xf32> to vector<16x48xbf16>
    %c0_17 = arith.constant 0 : index
    %c0_18 = arith.constant 0 : index
    %34 = vector.load %arg7[%c0_17, %c0_18] : memref<48x10xbf16, #tpu.memory_space<vmem>>, vector<48x10xbf16>
    %cst_19 = arith.constant dense<0.000000e+00> : vector<16x10xf32>
    %35 = tpu.matmul %33, %34, %cst_19 {dimension_numbers = #tpu.dot_dimension_numbers<[1], [0], [0], [1], [0, 0, 1, 1], [], []>} : vector<16x48xbf16>, vector<48x10xbf16>, vector<16x10xf32> -> vector<16x10xf32>
    %c0_20 = arith.constant 0 : index
    %c0_21 = arith.constant 0 : index
    %36 = vector.load %arg8[%c0_20, %c0_21] : memref<1x10xf32, #tpu.memory_space<vmem>>, vector<1x10xf32>
    %37 = vector.broadcast %36 : vector<1x10xf32> to vector<16x10xf32>
    %38 = arith.addf %35, %37 : vector<16x10xf32>
    %c0_22 = arith.constant 0 : index
    %c0_23 = arith.constant 0 : index
    %c0_24 = arith.constant 0 : index
    %39 = vector.load %arg9[%c0_22, %c0_23, %c0_24] : memref<1x16x48xbf16, #tpu.memory_space<vmem>>, vector<1x16x48xbf16>
    %40 = vector.shape_cast %39 : vector<1x16x48xbf16> to vector<16x48xbf16>
    %41 = vector.shape_cast %32 : vector<16x48xbf16> to vector<1x16x48xbf16>
    tpu.vector_store %arg9[%c0_22, %c0_23, %c0_24], %41 {strides = array<i32>} : memref<1x16x48xbf16, #tpu.memory_space<vmem>>, vector<1x16x48xbf16>,
    %42 = arith.truncf %38 : vector<16x10xf32> to vector<16x10xbf16>
    %c0_25 = arith.constant 0 : index
    %c0_26 = arith.constant 0 : index
    %c0_27 = arith.constant 0 : index
    %43 = vector.load %arg10[%c0_25, %c0_26, %c0_27] : memref<1x16x10xbf16, #tpu.memory_space<vmem>>, vector<1x16x10xbf16>
    %44 = vector.shape_cast %43 : vector<1x16x10xbf16> to vector<16x10xbf16>
    %45 = vector.shape_cast %42 : vector<16x10xbf16> to vector<1x16x10xbf16>
    tpu.vector_store %arg10[%c0_25, %c0_26, %c0_27], %45 {strides = array<i32>} : memref<1x16x10xbf16, #tpu.memory_space<vmem>>, vector<1x16x10xbf16>,
    %46 = arith.truncf %27 : vector<16x48xf32> to vector<16x48xbf16>
    %c0_28 = arith.constant 0 : index
    %c0_29 = arith.constant 0 : index
    %c0_30 = arith.constant 0 : index
    %47 = vector.load %arg11[%c0_28, %c0_29, %c0_30] : memref<1x16x48xbf16, #tpu.memory_space<vmem>>, vector<1x16x48xbf16>
    %48 = vector.shape_cast %47 : vector<1x16x48xbf16> to vector<16x48xbf16>
    %49 = vector.shape_cast %46 : vector<16x48xbf16> to vector<1x16x48xbf16>
    tpu.vector_store %arg11[%c0_28, %c0_29, %c0_30], %49 {strides = array<i32>} : memref<1x16x48xbf16, #tpu.memory_space<vmem>>, vector<1x16x48xbf16>,
    %c0_31 = arith.constant 0 : index
    %c0_32 = arith.constant 0 : index
    %c0_33 = arith.constant 0 : index
    %50 = vector.load %arg12[%c0_31, %c0_32, %c0_33] : memref<1x16x48xf32, #tpu.memory_space<vmem>>, vector<1x16x48xf32>
    %51 = vector.shape_cast %50 : vector<1x16x48xf32> to vector<16x48xf32>
    %52 = vector.shape_cast %22 : vector<16x48xf32> to vector<1x16x48xf32>
    tpu.vector_store %arg12[%c0_31, %c0_32, %c0_33], %52 {strides = array<i32>} : memref<1x16x48xf32, #tpu.memory_space<vmem>>, vector<1x16x48xf32>,
    %c0_34 = arith.constant 0 : index
    %c0_35 = arith.constant 0 : index
    %53 = vector.load %arg13[%c0_34, %c0_35] : memref<16x32xf32, #tpu.memory_space<vmem>>, vector<16x32xf32>
    tpu.vector_store %arg13[%c0_34, %c0_35], %10 {strides = array<i32>} : memref<16x32xf32, #tpu.memory_space<vmem>>, vector<16x32xf32>,
    %c0_36 = arith.constant 0 : index
    %c0_37 = arith.constant 0 : index
    %54 = vector.load %arg14[%c0_36, %c0_37] : memref<16x32xf32, #tpu.memory_space<vmem>>, vector<16x32xf32>
    tpu.vector_store %arg14[%c0_36, %c0_37], %16 {strides = array<i32>} : memref<16x32xf32, #tpu.memory_space<vmem>>, vector<16x32xf32>,
    return
  }
  func.func @transform_0(%arg0: i32, %arg1: i32) -> (i32, i32, i32) {
    %c0_i32 = arith.constant 0 : i32
    %c0_i32_0 = arith.constant 0 : i32
    return %arg1, %arg0, %c0_i32 : i32, i32, i32
  }
  func.func @transform_1(%arg0: i32, %arg1: i32) -> (i32, i32) {
    %c0_i32 = arith.constant 0 : i32
    %c0_i32_0 = arith.constant 0 : i32
    return %arg0, %c0_i32 : i32, i32
  }
  func.func @transform_2(%arg0: i32, %arg1: i32) -> (i32, i32) {
    %c0_i32 = arith.constant 0 : i32
    %c0_i32_0 = arith.constant 0 : i32
    return %arg0, %c0_i32 : i32, i32
  }
  func.func @transform_3(%arg0: i32, %arg1: i32) -> (i32, i32) {
    %c0_i32 = arith.constant 0 : i32
    %c0_i32_0 = arith.constant 0 : i32
    %c0_i32_1 = arith.constant 0 : i32
    return %c0_i32, %c0_i32_0 : i32, i32
  }
  func.func @transform_4(%arg0: i32, %arg1: i32) -> (i32, i32) {
    %c0_i32 = arith.constant 0 : i32
    %c0_i32_0 = arith.constant 0 : i32
    %c0_i32_1 = arith.constant 0 : i32
    return %c0_i32, %c0_i32_0 : i32, i32
  }
  func.func @transform_5(%arg0: i32, %arg1: i32) -> (i32, i32) {
    %c0_i32 = arith.constant 0 : i32
    %c0_i32_0 = arith.constant 0 : i32
    %c0_i32_1 = arith.constant 0 : i32
    return %c0_i32, %c0_i32_0 : i32, i32
  }
  func.func @transform_6(%arg0: i32, %arg1: i32) -> (i32, i32) {
    %c0_i32 = arith.constant 0 : i32
    %c0_i32_0 = arith.constant 0 : i32
    %c0_i32_1 = arith.constant 0 : i32
    return %c0_i32, %c0_i32_0 : i32, i32
  }
  func.func @transform_7(%arg0: i32, %arg1: i32) -> (i32, i32, i32) {
    %c0_i32 = arith.constant 0 : i32
    %c0_i32_0 = arith.constant 0 : i32
    return %arg1, %arg0, %c0_i32 : i32, i32, i32
  }
  func.func @transform_8(%arg0: i32, %arg1: i32) -> (i32, i32, i32) {
    %c0_i32 = arith.constant 0 : i32
    %c0_i32_0 = arith.constant 0 : i32
    return %arg1, %arg0, %c0_i32 : i32, i32, i32
  }
  func.func @transform_9(%arg0: i32, %arg1: i32) -> (i32, i32, i32) {
    %c0_i32 = arith.constant 0 : i32
    %c0_i32_0 = arith.constant 0 : i32
    return %arg1, %arg0, %c0_i32 : i32, i32, i32
  }
  func.func @transform_10(%arg0: i32, %arg1: i32) -> (i32, i32, i32) {
    %c0_i32 = arith.constant 0 : i32
    %c0_i32_0 = arith.constant 0 : i32
    return %arg1, %arg0, %c0_i32 : i32, i32, i32
  }
  func.func @transform_11(%arg0: i32, %arg1: i32) -> (i32, i32) {
    %c0_i32 = arith.constant 0 : i32
    %c0_i32_0 = arith.constant 0 : i32
    return %arg0, %c0_i32 : i32, i32
  }
  func.func @transform_12(%arg0: i32, %arg1: i32) -> (i32, i32) {
    %c0_i32 = arith.constant 0 : i32
    %c0_i32_0 = arith.constant 0 : i32
    return %arg0, %c0_i32 : i32, i32
  }
}

</mosaic_0001>

<llo_original>
// kernel: tpu_custom_call.1
$region0: #{tpu_custom_call.1}
  #allocation0 [shape = 'u32[]', space=smem, size = 0x4, offset = 0x4, fixed_abs, tag = 'smem constant byte address 0x4 - core index']
  #allocation1 [shape = 'u32[144,128]{1,0:T(1,128)}', space=vmem, size = 0x12000, scoped, tag = 'internal scratch']
  %s0 = inlined_call_operand.hbm [shape: f32[8,16,32], index: 0, kind: input, shape index: {}]
  %s1 = inlined_call_operand.vmem [shape: f32[16,32], index: 1, kind: input, shape index: {}, may-alias: {1,11}]
  %s2 = inlined_call_operand.vmem [shape: f32[16,32], index: 2, kind: input, shape index: {}, may-alias: {2,12}]
  %s3 = inlined_call_operand.vmem [shape: bf16[32,48], index: 3, kind: input, shape index: {}]
  %s4 = inlined_call_operand.vmem [shape: f32[1,48], index: 4, kind: input, shape index: {}]
  %s5 = inlined_call_operand.vmem [shape: bf16[48,10], index: 5, kind: input, shape index: {}]
  %s6 = inlined_call_operand.vmem [shape: f32[1,10], index: 6, kind: input, shape index: {}]
  %s7 = inlined_call_operand.hbm [shape: bf16[8,16,48], index: 7, kind: output, shape index: {0}]
  %s8 = inlined_call_operand.vmem [shape: bf16[8,16,10], index: 8, kind: output, shape index: {1}]
  %s9 = inlined_call_operand.hbm [shape: bf16[8,16,48], index: 9, kind: output, shape index: {2}]
  %s10 = inlined_call_operand.hbm [shape: f32[8,16,48], index: 10, kind: output, shape index: {3}]
  %s11 = inlined_call_operand.vmem [shape: f32[16,32], index: 11, kind: output, shape index: {4}, may-alias: {1,11}]
  %s12 = inlined_call_operand.vmem [shape: f32[16,32], index: 12, kind: output, shape index: {5}, may-alias: {2,12}]
  %13 = xla_tuple %s7, %s8, %s9, %s10, %s11, %s12
  %s14 = sld [smem:[#allocation0]]
  $region109: #{tpu_custom_call.1} parent=0
    _
  %s16 = ssub.s32 1, %s14
  %s17 = scalar_select 0, %s16, %s14
  $region1: #{tpu_custom_call.1} parent=0
    #allocation2 [shape = 'u8[16384]{0}', space=vmem, size = 0x4000, scoped, tag = 'input window, operand 0']
    #allocation3 [shape = 's32[2]{0}', space=sflag, size = 0x8, scoped, tag = 'scoped memory for tpu_custom_call.1']
    #allocation4 [shape = 's32[2]{0}', space=sflag, size = 0x8, scoped, tag = 'scoped memory for tpu_custom_call.1']
    #allocation5 [shape = 'u8[8192]{0}', space=vmem, size = 0x2000, scoped, tag = 'output window, operand 0']
    #allocation6 [shape = 'u8[8192]{0}', space=vmem, size = 0x2000, scoped, tag = 'output window, operand 2']
    #allocation7 [shape = 's32[2]{0}', space=sflag, size = 0x8, scoped, tag = 'scoped memory for tpu_custom_call.1']
    #allocation8 [shape = 'u8[16384]{0}', space=vmem, size = 0x4000, scoped, tag = 'output window, operand 3']
    %18 = vsyncpa [#allocation3], 0
    %s19 = scalar_lea.sflag [#allocation3], 1
    %20 = vsyncpa %s19, 0
    %21 = vsyncpa [#allocation4], 0
    %s22 = scalar_lea.sflag [#allocation4], 1
    %23 = vsyncpa %s22, 0
    %24 = vsyncpa [#allocation7], 0
    %s25 = scalar_lea.sflag [#allocation7], 1
    %26 = vsyncpa %s25, 0
    loop: start=0, step=1, limit=10
    $region2: #{tpu_custom_call.1} parent=1 // loop_pre_header
      _
    $region3: #{tpu_custom_call.1} parent=1 // loop_header
      %s28 = sphi 0, %s32
      %p29 = scmp.ge.s32.totalorder %s28, 10
      %s35 = sphi 0, %s47
      %s36 = sphi 0, %s43
      %s37 = sphi 0, %s35
      %s38 = sphi 0, %s36
      %s39 = sphi 0, %s37
      %s40 = sphi 0, %s38
      %s52 = sphi 0, %s54
      %s55 = sphi 0, %s52
      %s56 = sphi 0, %s55
      %s72 = sphi 0, %s56
      %s78 = sphi 0, %s80
      %s81 = sphi 0, %s78
      %s82 = sphi 0, %s81
      %s98 = sphi 0, %s82
      %s104 = sphi 0, %s106
      %s107 = sphi 0, %s104
      %s108 = sphi 0, %s107
      %s124 = sphi 0, %s108
      %s128 = sphi 0, %s128
      %s130 = sphi 0, %s128
      %s131 = sphi 0, %s130
      %s145 = sphi 0, %s131
      %s149 = sphi 0, %s149
      %s151 = sphi 0, %s149
      %s152 = sphi 0, %s151
      %s166 = sphi 0, %s152
      %s170 = sphi 0, %s170
      %s172 = sphi 0, %s170
      %s173 = sphi 0, %s172
      %s187 = sphi 0, %s173
      %s191 = sphi 0, %s191
      %s193 = sphi 0, %s191
      %s194 = sphi 0, %s193
      %s208 = sphi 0, %s194
      %s216 = sphi 0, %s218
      %s219 = sphi 0, %s216
      %s220 = sphi 0, %s219
      %s236 = sphi 0, %s220
      %s244 = sphi 0, %s246
      %s247 = sphi 0, %s244
      %s248 = sphi 0, %s247
      %s264 = sphi 0, %s248
      %s272 = sphi 0, %s274
      %s275 = sphi 0, %s272
      %s276 = sphi 0, %s275
      %s292 = sphi 0, %s276
      %s300 = sphi 0, %s302
      %s303 = sphi 0, %s300
      %s304 = sphi 0, %s303
      %s320 = sphi 0, %s304
      %s326 = sphi 0, %s328
      %s329 = sphi 0, %s326
      %s330 = sphi 0, %s329
      %s346 = sphi 0, %s330
      %s352 = sphi 0, %s354
      %s355 = sphi 0, %s352
      %s356 = sphi 0, %s355
      %s372 = sphi 0, %s356
    $region4: #{tpu_custom_call.1} parent=1 // loop_header_branch
      %31 = sbr.rel (%p29) target = $region8
    $region5: #{tpu_custom_call.1} parent=1 // loop_body
      %s33 = ssub.s32 %s28, 1
      %s34 = ssub.s32 %s28, 2
      %s41 = sadd.s32 1, %s36
      %p42 = scmp.ge.s32.totalorder %s41, 8
      %s43 = scalar_select %p42, 0, %s41
      %s44 = sadd.s32 1, %s35
      %s45 = scalar_select %p42, %s44, %s35
      %p46 = scmp.ge.s32.totalorder %s45, 1
      %s47 = scalar_select %p46, 0, %s45
      %s48 = ssub.s32 %s36, %s43
      %s49 = ssub.s32 %s35, %s47
      %s50 = sor.u32 %s48, %s49
      %p51 = scmp.eq.s32.totalorder %s50, 0
      %s53 = sadd.s32 %s52, 1
      %s54 = scalar_select %p51, %s52, %s53
      %p57 = pneg %p51
      %p58 = scmp.eq.s32.totalorder %s28, 7
      %p59 = por %p57, %p58
      %p60 = scmp.ne.s32.totalorder %s52, %s55
      %p61 = scmp.eq.s32.totalorder %s28, 0
      %p62 = por %p60, %p61
      %p63 = scmp.ne.s32.totalorder %s52, %s55
      %p64 = scmp.eq.s32.totalorder %s33, 7
      %p65 = por %p63, %p64
      %p66 = scmp.ne.s32.totalorder %s55, %s56
      %p67 = scmp.eq.s32.totalorder %s33, 0
      %p68 = por %p66, %p67
      %p69 = scmp.ne.s32.totalorder %s55, %s56
      %p70 = scmp.eq.s32.totalorder %s34, 7
      %p71 = por %p69, %p70
      %p73 = scmp.ne.s32.totalorder %s56, %s72
      %p74 = scmp.eq.s32.totalorder %s34, 0
      %p75 = por %p73, %p74
      %s76 = ssub.s32 %s35, %s47
      %p77 = scmp.eq.s32.totalorder %s76, 0
      %s79 = sadd.s32 %s78, 1
      %s80 = scalar_select %p77, %s78, %s79
      %p83 = pneg %p77
      %p84 = scmp.eq.s32.totalorder %s28, 7
      %p85 = por %p83, %p84
      %p86 = scmp.ne.s32.totalorder %s78, %s81
      %p87 = scmp.eq.s32.totalorder %s28, 0
      %p88 = por %p86, %p87
      %p89 = scmp.ne.s32.totalorder %s78, %s81
      %p90 = scmp.eq.s32.totalorder %s33, 7
      %p91 = por %p89, %p90
      %p92 = scmp.ne.s32.totalorder %s81, %s82
      %p93 = scmp.eq.s32.totalorder %s33, 0
      %p94 = por %p92, %p93
      %p95 = scmp.ne.s32.totalorder %s81, %s82
      %p96 = scmp.eq.s32.totalorder %s34, 7
      %p97 = por %p95, %p96
      %p99 = scmp.ne.s32.totalorder %s82, %s98
      %p100 = scmp.eq.s32.totalorder %s34, 0
      %p101 = por %p99, %p100
      %s102 = ssub.s32 %s35, %s47
      %p103 = scmp.eq.s32.totalorder %s102, 0
      %s105 = sadd.s32 %s104, 1
      %s106 = scalar_select %p103, %s104, %s105
      %p109 = pneg %p103
      %p110 = scmp.eq.s32.totalorder %s28, 7
      %p111 = por %p109, %p110
      %p112 = scmp.ne.s32.totalorder %s104, %s107
      %p113 = scmp.eq.s32.totalorder %s28, 0
      %p114 = por %p112, %p113
      %p115 = scmp.ne.s32.totalorder %s104, %s107
      %p116 = scmp.eq.s32.totalorder %s33, 7
      %p117 = por %p115, %p116
      %p118 = scmp.ne.s32.totalorder %s107, %s108
      %p119 = scmp.eq.s32.totalorder %s33, 0
      %p120 = por %p118, %p119
      %p121 = scmp.ne.s32.totalorder %s107, %s108
      %p122 = scmp.eq.s32.totalorder %s34, 7
      %p123 = por %p121, %p122
      %p125 = scmp.ne.s32.totalorder %s108, %s124
      %p126 = scmp.eq.s32.totalorder %s34, 0
      %p127 = por %p125, %p126
      %s129 = sadd.s32 %s128, 1
      %p132 = scmp.eq.s32.totalorder %s28, 7
      %p133 = scmp.ne.s32.totalorder %s128, %s130
      %p134 = scmp.eq.s32.totalorder %s28, 0
      %p135 = por %p133, %p134
      %p136 = scmp.ne.s32.totalorder %s128, %s130
      %p137 = scmp.eq.s32.totalorder %s33, 7
      %p138 = por %p136, %p137
      %p139 = scmp.ne.s32.totalorder %s130, %s131
      %p140 = scmp.eq.s32.totalorder %s33, 0
      %p141 = por %p139, %p140
      %p142 = scmp.ne.s32.totalorder %s130, %s131
      %p143 = scmp.eq.s32.totalorder %s34, 7
      %p144 = por %p142, %p143
      %p146 = scmp.ne.s32.totalorder %s131, %s145
      %p147 = scmp.eq.s32.totalorder %s34, 0
      %p148 = por %p146, %p147
      %s150 = sadd.s32 %s149, 1
      %p153 = scmp.eq.s32.totalorder %s28, 7
      %p154 = scmp.ne.s32.totalorder %s149, %s151
      %p155 = scmp.eq.s32.totalorder %s28, 0
      %p156 = por %p154, %p155
      %p157 = scmp.ne.s32.totalorder %s149, %s151
      %p158 = scmp.eq.s32.totalorder %s33, 7
      %p159 = por %p157, %p158
      %p160 = scmp.ne.s32.totalorder %s151, %s152
      %p161 = scmp.eq.s32.totalorder %s33, 0
      %p162 = por %p160, %p161
      %p163 = scmp.ne.s32.totalorder %s151, %s152
      %p164 = scmp.eq.s32.totalorder %s34, 7
      %p165 = por %p163, %p164
      %p167 = scmp.ne.s32.totalorder %s152, %s166
      %p168 = scmp.eq.s32.totalorder %s34, 0
      %p169 = por %p167, %p168
      %s171 = sadd.s32 %s170, 1
      %p174 = scmp.eq.s32.totalorder %s28, 7
      %p175 = scmp.ne.s32.totalorder %s170, %s172
      %p176 = scmp.eq.s32.totalorder %s28, 0
      %p177 = por %p175, %p176
      %p178 = scmp.ne.s32.totalorder %s170, %s172
      %p179 = scmp.eq.s32.totalorder %s33, 7
      %p180 = por %p178, %p179
      %p181 = scmp.ne.s32.totalorder %s172, %s173
      %p182 = scmp.eq.s32.totalorder %s33, 0
      %p183 = por %p181, %p182
      %p184 = scmp.ne.s32.totalorder %s172, %s173
      %p185 = scmp.eq.s32.totalorder %s34, 7
      %p186 = por %p184, %p185
      %p188 = scmp.ne.s32.totalorder %s173, %s187
      %p189 = scmp.eq.s32.totalorder %s34, 0
      %p190 = por %p188, %p189
      %s192 = sadd.s32 %s191, 1
      %p195 = scmp.eq.s32.totalorder %s28, 7
      %p196 = scmp.ne.s32.totalorder %s191, %s193
      %p197 = scmp.eq.s32.totalorder %s28, 0
      %p198 = por %p196, %p197
      %p199 = scmp.ne.s32.totalorder %s191, %s193
      %p200 = scmp.eq.s32.totalorder %s33, 7
      %p201 = por %p199, %p200
      %p202 = scmp.ne.s32.totalorder %s193, %s194
      %p203 = scmp.eq.s32.totalorder %s33, 0
      %p204 = por %p202, %p203
      %p205 = scmp.ne.s32.totalorder %s193, %s194
      %p206 = scmp.eq.s32.totalorder %s34, 7
      %p207 = por %p205, %p206
      %p209 = scmp.ne.s32.totalorder %s194, %s208
      %p210 = scmp.eq.s32.totalorder %s34, 0
      %p211 = por %p209, %p210
      %s212 = ssub.s32 %s36, %s43
      %s213 = ssub.s32 %s35, %s47
      %s214 = sor.u32 %s212, %s213
      %p215 = scmp.eq.s32.totalorder %s214, 0
      %s217 = sadd.s32 %s216, 1
      %s218 = scalar_select %p215, %s216, %s217
      %p221 = pneg %p215
      %p222 = scmp.eq.s32.totalorder %s28, 7
      %p223 = por %p221, %p222
      %p224 = scmp.ne.s32.totalorder %s216, %s219
      %p225 = scmp.eq.s32.totalorder %s28, 0
      %p226 = por %p224, %p225
      %p227 = scmp.ne.s32.totalorder %s216, %s219
      %p228 = scmp.eq.s32.totalorder %s33, 7
      %p229 = por %p227, %p228
      %p230 = scmp.ne.s32.totalorder %s219, %s220
      %p231 = scmp.eq.s32.totalorder %s33, 0
      %p232 = por %p230, %p231
      %p233 = scmp.ne.s32.totalorder %s219, %s220
      %p234 = scmp.eq.s32.totalorder %s34, 7
      %p235 = por %p233, %p234
      %p237 = scmp.ne.s32.totalorder %s220, %s236
      %p238 = scmp.eq.s32.totalorder %s34, 0
      %p239 = por %p237, %p238
      %s240 = ssub.s32 %s36, %s43
      %s241 = ssub.s32 %s35, %s47
      %s242 = sor.u32 %s240, %s241
      %p243 = scmp.eq.s32.totalorder %s242, 0
      %s245 = sadd.s32 %s244, 1
      %s246 = scalar_select %p243, %s244, %s245
      %p249 = pneg %p243
      %p250 = scmp.eq.s32.totalorder %s28, 7
      %p251 = por %p249, %p250
      %p252 = scmp.ne.s32.totalorder %s244, %s247
      %p253 = scmp.eq.s32.totalorder %s28, 0
      %p254 = por %p252, %p253
      %p255 = scmp.ne.s32.totalorder %s244, %s247
      %p256 = scmp.eq.s32.totalorder %s33, 7
      %p257 = por %p255, %p256
      %p258 = scmp.ne.s32.totalorder %s247, %s248
      %p259 = scmp.eq.s32.totalorder %s33, 0
      %p260 = por %p258, %p259
      %p261 = scmp.ne.s32.totalorder %s247, %s248
      %p262 = scmp.eq.s32.totalorder %s34, 7
      %p263 = por %p261, %p262
      %p265 = scmp.ne.s32.totalorder %s248, %s264
      %p266 = scmp.eq.s32.totalorder %s34, 0
      %p267 = por %p265, %p266
      %s268 = ssub.s32 %s36, %s43
      %s269 = ssub.s32 %s35, %s47
      %s270 = sor.u32 %s268, %s269
      %p271 = scmp.eq.s32.totalorder %s270, 0
      %s273 = sadd.s32 %s272, 1
      %s274 = scalar_select %p271, %s272, %s273
      %p277 = pneg %p271
      %p278 = scmp.eq.s32.totalorder %s28, 7
      %p279 = por %p277, %p278
      %p280 = scmp.ne.s32.totalorder %s272, %s275
      %p281 = scmp.eq.s32.totalorder %s28, 0
      %p282 = por %p280, %p281
      %p283 = scmp.ne.s32.totalorder %s272, %s275
      %p284 = scmp.eq.s32.totalorder %s33, 7
      %p285 = por %p283, %p284
      %p286 = scmp.ne.s32.totalorder %s275, %s276
      %p287 = scmp.eq.s32.totalorder %s33, 0
      %p288 = por %p286, %p287
      %p289 = scmp.ne.s32.totalorder %s275, %s276
      %p290 = scmp.eq.s32.totalorder %s34, 7
      %p291 = por %p289, %p290
      %p293 = scmp.ne.s32.totalorder %s276, %s292
      %p294 = scmp.eq.s32.totalorder %s34, 0
      %p295 = por %p293, %p294
      %s296 = ssub.s32 %s36, %s43
      %s297 = ssub.s32 %s35, %s47
      %s298 = sor.u32 %s296, %s297
      %p299 = scmp.eq.s32.totalorder %s298, 0
      %s301 = sadd.s32 %s300, 1
      %s302 = scalar_select %p299, %s300, %s301
      %p305 = pneg %p299
      %p306 = scmp.eq.s32.totalorder %s28, 7
      %p307 = por %p305, %p306
      %p308 = scmp.ne.s32.totalorder %s300, %s303
      %p309 = scmp.eq.s32.totalorder %s28, 0
      %p310 = por %p308, %p309
      %p311 = scmp.ne.s32.totalorder %s300, %s303
      %p312 = scmp.eq.s32.totalorder %s33, 7
      %p313 = por %p311, %p312
      %p314 = scmp.ne.s32.totalorder %s303, %s304
      %p315 = scmp.eq.s32.totalorder %s33, 0
      %p316 = por %p314, %p315
      %p317 = scmp.ne.s32.totalorder %s303, %s304
      %p318 = scmp.eq.s32.totalorder %s34, 7
      %p319 = por %p317, %p318
      %p321 = scmp.ne.s32.totalorder %s304, %s320
      %p322 = scmp.eq.s32.totalorder %s34, 0
      %p323 = por %p321, %p322
      %s324 = ssub.s32 %s35, %s47
      %p325 = scmp.eq.s32.totalorder %s324, 0
      %s327 = sadd.s32 %s326, 1
      %s328 = scalar_select %p325, %s326, %s327
      %p331 = pneg %p325
      %p332 = scmp.eq.s32.totalorder %s28, 7
      %p333 = por %p331, %p332
      %p334 = scmp.ne.s32.totalorder %s326, %s329
      %p335 = scmp.eq.s32.totalorder %s28, 0
      %p336 = por %p334, %p335
      %p337 = scmp.ne.s32.totalorder %s326, %s329
      %p338 = scmp.eq.s32.totalorder %s33, 7
      %p339 = por %p337, %p338
      %p340 = scmp.ne.s32.totalorder %s329, %s330
      %p341 = scmp.eq.s32.totalorder %s33, 0
      %p342 = por %p340, %p341
      %p343 = scmp.ne.s32.totalorder %s329, %s330
      %p344 = scmp.eq.s32.totalorder %s34, 7
      %p345 = por %p343, %p344
      %p347 = scmp.ne.s32.totalorder %s330, %s346
      %p348 = scmp.eq.s32.totalorder %s34, 0
      %p349 = por %p347, %p348
      %s350 = ssub.s32 %s35, %s47
      %p351 = scmp.eq.s32.totalorder %s350, 0
      %s353 = sadd.s32 %s352, 1
      %s354 = scalar_select %p351, %s352, %s353
      %p357 = pneg %p351
      %p358 = scmp.eq.s32.totalorder %s28, 7
      %p359 = por %p357, %p358
      %p360 = scmp.ne.s32.totalorder %s352, %s355
      %p361 = scmp.eq.s32.totalorder %s28, 0
      %p362 = por %p360, %p361
      %p363 = scmp.ne.s32.totalorder %s352, %s355
      %p364 = scmp.eq.s32.totalorder %s33, 7
      %p365 = por %p363, %p364
      %p366 = scmp.ne.s32.totalorder %s355, %s356
      %p367 = scmp.eq.s32.totalorder %s33, 0
      %p368 = por %p366, %p367
      %p369 = scmp.ne.s32.totalorder %s355, %s356
      %p370 = scmp.eq.s32.totalorder %s34, 7
      %p371 = por %p369, %p370
      %p373 = scmp.ne.s32.totalorder %s356, %s372
      %p374 = scmp.eq.s32.totalorder %s34, 0
      %p375 = por %p373, %p374
      %p376 = scmp.le.s32.totalorder 1, %s28
      %p377 = scmp.lt.s32.totalorder %s28, 9
      %p378 = pnand %p376, %p377
      %p379 = pneg %p378
      // Predicated region
      $region9: #{tpu_custom_call.1} parent=5 // pred_check
        _
      $region10: #{tpu_custom_call.1} parent=5 // pred_check_branch
        %381 = sbr.rel (%p378) target = $region12
      $region11: #{tpu_custom_call.1} parent=5 // pred_region
        %s382 = ssub.s32 %s28, 1
        // Predicated region
        $region13: #{tpu_custom_call.1} parent=11 // pred_check
          %p383 = pneg %p94
        $region14: #{tpu_custom_call.1} parent=11 // pred_check_branch
          %385 = sbr.rel (%p383) target = $region16
        $region15: #{tpu_custom_call.1} parent=11 // pred_region
          %s386 = smul.u32 2, %s37
          %p387 = scmp.lt.s32.totalorder %s386, 1
          %s388 = scalar_select %p387, %s386, 1
          %s389 = smul.addr %s388, 8
          %s390 = scalar_lea.vmem %s1, %s389
          %s391 = smul.u32 2, %s37
        $region16: #{tpu_custom_call.1} parent=11 // pred_fallthru
          _
        // Predicated region
        $region17: #{tpu_custom_call.1} parent=11 // pred_check
          %p392 = pneg %p120
        $region18: #{tpu_custom_call.1} parent=11 // pred_check_branch
          %394 = sbr.rel (%p392) target = $region20
        $region19: #{tpu_custom_call.1} parent=11 // pred_region
          %s395 = smul.u32 2, %s37
          %p396 = scmp.lt.s32.totalorder %s395, 1
          %s397 = scalar_select %p396, %s395, 1
          %s398 = smul.addr %s397, 8
          %s399 = scalar_lea.vmem %s2, %s398
          %s400 = smul.u32 2, %s37
        $region20: #{tpu_custom_call.1} parent=11 // pred_fallthru
          _
        // Predicated region
        $region21: #{tpu_custom_call.1} parent=11 // pred_check
          %p401 = pneg %p141
        $region22: #{tpu_custom_call.1} parent=11 // pred_check_branch
          %403 = sbr.rel (%p401) target = $region24
        $region23: #{tpu_custom_call.1} parent=11 // pred_region
          _
        $region24: #{tpu_custom_call.1} parent=11 // pred_fallthru
          _
        // Predicated region
        $region25: #{tpu_custom_call.1} parent=11 // pred_check
          %p404 = pneg %p162
        $region26: #{tpu_custom_call.1} parent=11 // pred_check_branch
          %406 = sbr.rel (%p404) target = $region28
        $region27: #{tpu_custom_call.1} parent=11 // pred_region
          _
        $region28: #{tpu_custom_call.1} parent=11 // pred_fallthru
          _
        // Predicated region
        $region29: #{tpu_custom_call.1} parent=11 // pred_check
          %p407 = pneg %p183
        $region30: #{tpu_custom_call.1} parent=11 // pred_check_branch
          %409 = sbr.rel (%p407) target = $region32
        $region31: #{tpu_custom_call.1} parent=11 // pred_region
          _
        $region32: #{tpu_custom_call.1} parent=11 // pred_fallthru
          _
        // Predicated region
        $region33: #{tpu_custom_call.1} parent=11 // pred_check
          %p410 = pneg %p204
        $region34: #{tpu_custom_call.1} parent=11 // pred_check_branch
          %412 = sbr.rel (%p410) target = $region36
        $region35: #{tpu_custom_call.1} parent=11 // pred_region
          _
        $region36: #{tpu_custom_call.1} parent=11 // pred_fallthru
          _
      $region12: #{tpu_custom_call.1} parent=5 // pred_fallthru
        _
      %p413 = scmp.lt.s32.totalorder %s28, 8
      // Predicated region
      $region37: #{tpu_custom_call.1} parent=5 // pred_check
        %p414 = pneg %p413
      $region38: #{tpu_custom_call.1} parent=5 // pred_check_branch
        %416 = sbr.rel (%p414) target = $region40
      $region39: #{tpu_custom_call.1} parent=5 // pred_region
        // Predicated region
        $region41: #{tpu_custom_call.1} parent=39 // pred_check
          %p417 = pneg %p62
        $region42: #{tpu_custom_call.1} parent=39 // pred_check_branch
          %419 = sbr.rel (%p417) target = $region44
        $region43: #{tpu_custom_call.1} parent=39 // pred_region
          %s420 = sand.u32 %s52, 1
          %s421 = scalar_lea.sflag [#allocation3], %s420
          %s422 = sand.u32 %s52, 1
          %s423 = smul.addr %s422, 16
          %s424 = scalar_lea.vmem [#allocation2], %s423
          %s425 = smul.u32 2, %s35
          %s427 = ssub.s32 256, 256
          %428 = vsyncadd %s421, %s427
          %s429 = smul.addr %s36, 2
          %s430 = sadd.s32 %s425, %s429
          %s431 = smul.addr %s430, 128
          %s432 = scalar_lea.hbm %s0, %s431
          %s433 = sshll.u32 %s424, 4
          %s434 = int_to_ptr.vmem [resolvable:$true] %s433
          %439 = dma.hbm_to_vmem [thread:$0]  %s432, 256, %s434, %s421, 128, 128, 8
        $region44: #{tpu_custom_call.1} parent=39 // pred_fallthru
          _
      $region40: #{tpu_custom_call.1} parent=5 // pred_fallthru
        _
      %p440 = scmp.le.s32.totalorder 1, %s28
      %p441 = scmp.lt.s32.totalorder %s28, 9
      %p442 = pnand %p440, %p441
      %p443 = pneg %p442
      // Predicated region
      $region45: #{tpu_custom_call.1} parent=5 // pred_check
        _
      $region46: #{tpu_custom_call.1} parent=5 // pred_check_branch
        %445 = sbr.rel (%p442) target = $region48
      $region47: #{tpu_custom_call.1} parent=5 // pred_region
        %s446 = ssub.s32 %s28, 1
        %s447 = sand.u32 %s55, 1
        %s448 = scalar_lea.sflag [#allocation3], %s447
        %s449 = sand.u32 %s55, 1
        %s450 = smul.addr %s449, 16
        %s451 = scalar_lea.vmem [#allocation2], %s450
        // Predicated region
        $region49: #{tpu_custom_call.1} parent=47 // pred_check
          %p452 = pneg %p68
        $region50: #{tpu_custom_call.1} parent=47 // pred_check_branch
          %454 = sbr.rel (%p452) target = $region52
        $region51: #{tpu_custom_call.1} parent=47 // pred_region
          %455 = dma.done %s448, 256
        $region52: #{tpu_custom_call.1} parent=47 // pred_fallthru
          _
        %s456 = sand.u32 %s55, 1
        %s457 = scalar_lea.sflag [#allocation3], %s456
        %s458 = sand.u32 %s55, 1
        %s459 = smul.addr %s458, 16
        %s460 = scalar_lea.vmem [#allocation2], %s459
        %p461 = pneg %p68
        %p462 = pneg %p65
        %s463 = smul.u32 2, %s37
        %p464 = scmp.lt.s32.totalorder %s463, 1
        %s465 = scalar_select %p464, %s463, 1
        %s466 = smul.addr %s465, 8
        %s467 = scalar_lea.vmem %s1, %s466
        %p468 = pneg %p94
        %p469 = pneg %p91
        %s470 = smul.u32 2, %s37
        %p471 = scmp.lt.s32.totalorder %s470, 1
        %s472 = scalar_select %p471, %s470, 1
        %s473 = smul.addr %s472, 8
        %s474 = scalar_lea.vmem %s2, %s473
        %p475 = pneg %p120
        %p476 = pneg %p117
        %p477 = pneg %p141
        %p478 = pneg %p138
        %p479 = pneg %p162
        %p480 = pneg %p159
        %p481 = pneg %p183
        %p482 = pneg %p180
        %p483 = pneg %p204
        %p484 = pneg %p201
        %p485 = pneg %p232
        %p486 = pneg %p229
        %s487 = sand.u32 %s219, 1
        %s488 = scalar_lea.sflag [#allocation4], %s487
        %s489 = sand.u32 %s219, 1
        %s490 = smul.addr %s489, 8
        %s491 = scalar_lea.vmem [#allocation5], %s490
        %p492 = pneg %p260
        %p493 = pneg %p257
        %s494 = smul.u32 2, %s37
        %p495 = scmp.lt.s32.totalorder %s38, 7
        %s496 = scalar_select %p495, %s38, 7
        %p497 = scmp.lt.s32.totalorder %s494, 1
        %s498 = scalar_select %p497, %s494, 1
        %s499 = smul.addr %s496, 2
        %s500 = sadd.s32 %s498, %s499
        %s501 = smul.addr %s500, 4
        %s502 = scalar_lea.vmem %s8, %s501
        %p503 = pneg %p288
        %p504 = pneg %p285
        %s505 = sand.u32 %s33, 1
        %s506 = scalar_lea.sflag [#allocation7], %s505
        %s507 = sand.u32 %s275, 1
        %s508 = smul.addr %s507, 8
        %s509 = scalar_lea.vmem [#allocation6], %s508
        %p510 = pneg %p316
        %p511 = pneg %p313
        %s512 = sand.u32 %s33, 1
        %s513 = scalar_lea.sflag [#allocation7], %s512
        %s514 = sand.u32 %s303, 1
        %s515 = smul.addr %s514, 16
        %s516 = scalar_lea.vmem [#allocation8], %s515
        %p517 = pneg %p342
        %p518 = pneg %p339
        %s519 = smul.u32 2, %s37
        %p520 = scmp.lt.s32.totalorder %s519, 1
        %s521 = scalar_select %p520, %s519, 1
        %s522 = smul.addr %s521, 8
        %s523 = scalar_lea.vmem %s11, %s522
        %p524 = pneg %p368
        %p525 = pneg %p365
        %s526 = smul.u32 2, %s37
        %p527 = scmp.lt.s32.totalorder %s526, 1
        %s528 = scalar_select %p527, %s526, 1
        %s529 = smul.addr %s528, 8
        %s530 = scalar_lea.vmem %s12, %s529
        %s531 = smul.u32 2, %s37
        %s532 = smul.u32 2, %s37
        %p533 = scmp.lt.s32.totalorder %s532, 1
        %s534 = scalar_select %p533, %s532, 1
        %s535 = smul.addr %s534, 8
        %s536 = scalar_lea.vmem %s1, %s535
        %s537 = smul.u32 2, %s37
        %s538 = smul.u32 2, %s37
        %p539 = scmp.lt.s32.totalorder %s538, 1
        %s540 = scalar_select %p539, %s538, 1
        %s541 = smul.addr %s540, 8
        %s542 = scalar_lea.vmem %s2, %s541
        %s543 = smul.u32 2, %s37
        %s544 = smul.u32 2, %s37
        %s545 = smul.u32 2, %s37
        %p546 = scmp.lt.s32.totalorder %s38, 7
        %s547 = scalar_select %p546, %s38, 7
        %p548 = scmp.lt.s32.totalorder %s545, 1
        %s549 = scalar_select %p548, %s545, 1
        %s550 = smul.addr %s547, 2
        %s551 = sadd.s32 %s549, %s550
        %s552 = smul.addr %s551, 4
        %s553 = scalar_lea.vmem %s8, %s552
        %s554 = smul.u32 2, %s37
        %s555 = smul.u32 2, %s37
        %s556 = smul.u32 2, %s37
        %s557 = smul.u32 2, %s37
        %p558 = scmp.lt.s32.totalorder %s557, 1
        %s559 = scalar_select %p558, %s557, 1
        %s560 = smul.addr %s559, 8
        %s561 = scalar_lea.vmem %s11, %s560
        %s562 = smul.u32 2, %s37
        %s563 = smul.u32 2, %s37
        %p564 = scmp.lt.s32.totalorder %s563, 1
        %s565 = scalar_select %p564, %s563, 1
        %s566 = smul.addr %s565, 8
        %s567 = scalar_lea.vmem %s12, %s566
        %s568 = smul.u32 2, %s37
        %p570 = scmp.eq.s32.totalorder %s38, 0
        // Predicated region
        $region53: #{tpu_custom_call.1} parent=47 // pred_check
          %p571 = pneg %p570
        $region54: #{tpu_custom_call.1} parent=47 // pred_check_branch
          %573 = sbr.rel (%p571) target = $region56
        $region55: #{tpu_custom_call.1} parent=47 // pred_region
          %v574 = vld [vmem:[%s536] sm:$0xff]
          %v575 = vld [vmem:[%s536 + $0x8] sm:$0xff]
          %vm576 = vcmask 261120
          %577 = vst.msk [vmem:[%s561] sm:$0xff] %vm576, %v574
          %578 = vst.msk [vmem:[%s561 + $0x8] sm:$0xff] %vm576, %v575
          %v579 = vld [vmem:[%s542] sm:$0xff]
          %v580 = vld [vmem:[%s542 + $0x8] sm:$0xff]
          %581 = vst.msk [vmem:[%s567] sm:$0xff] %vm576, %v579
          %582 = vst.msk [vmem:[%s567 + $0x8] sm:$0xff] %vm576, %v580
        $region56: #{tpu_custom_call.1} parent=47 // pred_fallthru
          _
        %v583 = vld [vmem:[%s451] sm:$0xff]
        %v584 = vld [vmem:[%s451 + $0x8] sm:$0xff]
        %v585 = vmul.f32 %v583, 6.6666665
        %v586 = vmul.f32 %v584, 6.6666665
        %v587 = vld [vmem:[%s561] sm:$0xff]
        %v588 = vld [vmem:[%s561 + $0x8] sm:$0xff]
        %v589 = vmul.f32 %v587, 0.85
        %v590 = vmul.f32 %v588, 0.85
        %v591 = vadd.f32 %v585, %v589
        %v592 = vadd.f32 %v586, %v590
        %v593 = vld [vmem:[%s567] sm:$0xff]
        %v594 = vld [vmem:[%s567 + $0x8] sm:$0xff]
        %v595 = vmul.f32 %v593, 0.9
        %v596 = vmul.f32 %v594, 0.9
        %v597 = vmul.f32 %v591, 10.0
        %v598 = vmul.f32 %v592, 10.0
        %v599 = vadd.f32 %v595, %v597
        %v600 = vadd.f32 %v596, %v598
        %v601 = vpack.c.bf16 %v600, %v599
        %v602 = vld [vmem:[%s3] sm:$0xf]
        %v603 = vld [vmem:[%s3 + $0x4] sm:$0xf]
        %v604 = vld [vmem:[%s3 + $0x8] sm:$0xf]
        %v605 = vld [vmem:[%s3 + $0xc] sm:$0xf]
        %v606 = vld [vmem:[%s4] sm:$0x1]
        %v608 = vlaneseq
        %v609 = vshrl.u32 %v608, 7
        %v610 = vsub.s32 0, %v609
        %v611 = vrot.slane %v606, %v610
        %v617 = vunpack.c.l.b16 %v602
        %v618 = vunpack.c.l.b16 %v603
        %v619 = vunpack.c.l.b16 %v604
        %v620 = vunpack.c.l.b16 %v605
        %v621 = vpack.c.b16 %v618, %v617
        %v622 = vpack.c.b16 %v620, %v619
        %vm625 = vcmask 261120
        %v627 = vsel %vm625, %v601, 0
        %629 = vmatprep.subr.bf16.mxu0 0
        %630 = vmatpush1.bf16.msra.mxu0 0
        %631 = vmatprep.subr.bf16.mxu0 0
        %632 = vmatpush1.bf16.msra.mxu0 0
        %633 = vmatprep.subr.bf16.mxu0 0
        %634 = vmatpush1.bf16.msra.mxu0 0
        %635 = vmatprep.subr.bf16.mxu0 0
        %636 = vmatpush1.bf16.msra.mxu0 0
        %637 = vmatprep.subr.bf16.mxu0 0
        %638 = vmatpush1.bf16.msra.mxu0 0
        %639 = vmatprep.subr.bf16.mxu0 0
        %640 = vmatpush1.bf16.msra.mxu0 0
        %641 = vmatprep.subr.bf16.mxu0 0
        %642 = vmatpush1.bf16.msra.mxu0 %v622
        %643 = vmatprep.subr.bf16.mxu0 0
        %644 = vmatpush1.bf16.msra.mxu0 %v621
        %645 = vmatprep.subr.bf16.mxu0 0
        %646 = vmatpush2.bf16.msra.mxu0 0
        %647 = vmatprep.subr.bf16.mxu0 0
        %648 = vmatpush2.bf16.msra.mxu0 0
        %649 = vmatprep.subr.bf16.mxu0 0
        %650 = vmatpush2.bf16.msra.mxu0 0
        %651 = vmatprep.subr.bf16.mxu0 0
        %652 = vmatpush2.bf16.msra.mxu0 0
        %653 = vmatprep.subr.bf16.mxu0 0
        %654 = vmatpush2.bf16.msra.mxu0 0
        %655 = vmatprep.subr.bf16.mxu0 0
        %656 = vmatpush2.bf16.msra.mxu0 0
        %657 = vmatprep.subr.bf16.mxu0 0
        %658 = vmatpush2.bf16.msra.mxu0 0
        %659 = vmatprep.subr.bf16.mxu0 0
        %660 = vmatpush2.bf16.msra.mxu0 0
        %661 = vmatprep.mubr.bf16.mxu0 0
        %662 = vmatmul.mubr.bf16.gmra.mxu0 %v627
        %v663 = vpop.f32.mrf.mxu0
        %v664 = vadd.f32 %v611, %v663
        %v665 = vpop.f32.mrf.mxu0
        %v666 = vpop.f32.mrf.mxu0
        %v667 = vadd.f32 %v611, %v666
        %v668 = vpop.f32.mrf.mxu0
        %669 = vdwg.mxu0
        %v670 = vxor.u32 %v664, 2147483648
        %v671 = vxor.u32 %v667, 2147483648
        %v672 = vmul.f32 %v670, 1.442695
        %v673 = vpow.pop %v672
        %v674 = vmul.f32 %v671, 1.442695
        %v675 = vpow.pop %v674
        %v676 = vadd.f32 %v673, 1.0
        %v677 = vadd.f32 %v675, 1.0
        %v678 = vrcp.pop %v676
        %v679 = vmul.f32 1.0, %v678
        %v680 = vrcp.pop %v677
        %v681 = vmul.f32 1.0, %v680
        %vm682 = vcmp.gt.f32.partialorder %v664, 0.0
        %vm683 = vcmp.gt.f32.partialorder %v667, 0.0
        %v684 = vsel %vm682, 1, 0
        %v685 = vsel %vm683, 1, 0
        %v686 = vcvt.s32.f32 %v684
        %v687 = vcvt.s32.f32 %v685
        %v688 = vpack.c.bf16 %v687, %v686
        %v689 = vpack.c.bf16 %v681, %v679
        %v690 = vld [vmem:[%s5] sm:$0xf]
        %v691 = vld [vmem:[%s5 + $0x4] sm:$0xf]
        %v692 = vld [vmem:[%s5 + $0x8] sm:$0xf]
        %v693 = vld [vmem:[%s5 + $0xc] sm:$0xf]
        %v694 = vld [vmem:[%s5 + $0x10] sm:$0xf]
        %v695 = vld [vmem:[%s5 + $0x14] sm:$0xf]
        %v696 = vld [vmem:[%s6] sm:$0x1]
        %v698 = vlaneseq
        %v699 = vshrl.u32 %v698, 7
        %v700 = vsub.s32 0, %v699
        %v701 = vrot.slane %v696, %v700
        %v709 = vunpack.c.l.b16 %v690
        %v710 = vunpack.c.l.b16 %v691
        %v711 = vunpack.c.l.b16 %v692
        %v712 = vunpack.c.l.b16 %v693
        %v713 = vunpack.c.l.b16 %v694
        %v714 = vunpack.c.l.b16 %v695
        %v715 = vpack.c.b16 %v710, %v709
        %v716 = vpack.c.b16 %v712, %v711
        %v717 = vpack.c.b16 %v714, %v713
        %vm721 = vcmask 392192
        %v723 = vsel %vm721, %v689, 0
        %725 = vmatprep.subr.bf16.mxu0 0
        %726 = vmatpush1.bf16.msra.mxu0 0
        %727 = vmatprep.subr.bf16.mxu0 0
        %728 = vmatpush1.bf16.msra.mxu0 0
        %729 = vmatprep.subr.bf16.mxu0 0
        %730 = vmatpush1.bf16.msra.mxu0 0
        %731 = vmatprep.subr.bf16.mxu0 0
        %732 = vmatpush1.bf16.msra.mxu0 0
        %733 = vmatprep.subr.bf16.mxu0 0
        %734 = vmatpush1.bf16.msra.mxu0 0
        %735 = vmatprep.subr.bf16.mxu0 0
        %736 = vmatpush1.bf16.msra.mxu0 %v717
        %737 = vmatprep.subr.bf16.mxu0 0
        %738 = vmatpush1.bf16.msra.mxu0 %v716
        %739 = vmatprep.subr.bf16.mxu0 0
        %740 = vmatpush1.bf16.msra.mxu0 %v715
        %741 = vmatprep.subr.bf16.mxu0 0
        %742 = vmatpush2.bf16.msra.mxu0 0
        %743 = vmatprep.subr.bf16.mxu0 0
        %744 = vmatpush2.bf16.msra.mxu0 0
        %745 = vmatprep.subr.bf16.mxu0 0
        %746 = vmatpush2.bf16.msra.mxu0 0
        %747 = vmatprep.subr.bf16.mxu0 0
        %748 = vmatpush2.bf16.msra.mxu0 0
        %749 = vmatprep.subr.bf16.mxu0 0
        %750 = vmatpush2.bf16.msra.mxu0 0
        %751 = vmatprep.subr.bf16.mxu0 0
        %752 = vmatpush2.bf16.msra.mxu0 0
        %753 = vmatprep.subr.bf16.mxu0 0
        %754 = vmatpush2.bf16.msra.mxu0 0
        %755 = vmatprep.subr.bf16.mxu0 0
        %756 = vmatpush2.bf16.msra.mxu0 0
        %757 = vmatprep.mubr.bf16.mxu0 0
        %758 = vmatmul.mubr.bf16.gmra.mxu0 %v723
        %v759 = vpop.f32.mrf.mxu0
        %v760 = vadd.f32 %v701, %v759
        %v761 = vpop.f32.mrf.mxu0
        %v762 = vpop.f32.mrf.mxu0
        %v763 = vadd.f32 %v701, %v762
        %v764 = vpop.f32.mrf.mxu0
        %765 = vdwg.mxu0
        %v767 = vunpack.c.l.b16 %v688
        %v768 = vunpack.c.h.b16 %v688
        %v769 = vpack.c.b16 %v767, %v767
        %v770 = vpack.c.b16 %v768, %v768
        %vm773 = vcmask 388096
        %774 = vst.msk [vmem:[%s491] sm:$0xf] %vm773, %v769
        %775 = vst.msk [vmem:[%s491 + $0x4] sm:$0xf] %vm773, %v770
        %v776 = vpack.c.bf16 %v763, %v760
        %v778 = vunpack.c.l.b16 %v776
        %v779 = vunpack.c.h.b16 %v776
        %v780 = vpack.c.b16 %v778, %v778
        %v781 = vpack.c.b16 %v779, %v779
        %vm784 = vcmask 76800
        %785 = vst.msk [vmem:[%s553] sm:$0xf] %vm784, %v780
        %786 = vst.msk [vmem:[%s553 + $0x4] sm:$0xf] %vm784, %v781
        %v788 = vunpack.c.l.b16 %v689
        %v789 = vunpack.c.h.b16 %v689
        %v790 = vpack.c.b16 %v788, %v788
        %v791 = vpack.c.b16 %v789, %v789
        %794 = vst.msk [vmem:[%s509] sm:$0xf] %vm773, %v790
        %795 = vst.msk [vmem:[%s509 + $0x4] sm:$0xf] %vm773, %v791
        %796 = vst.msk [vmem:[%s516] sm:$0xff] %vm721, %v664
        %797 = vst.msk [vmem:[%s516 + $0x8] sm:$0xff] %vm721, %v667
        %798 = vst.msk [vmem:[%s561] sm:$0xff] %vm625, %v591
        %799 = vst.msk [vmem:[%s561 + $0x8] sm:$0xff] %vm625, %v592
        %800 = vst.msk [vmem:[%s567] sm:$0xff] %vm625, %v599
        %801 = vst.msk [vmem:[%s567 + $0x8] sm:$0xff] %vm625, %v600
        %s802 = sand.u32 %s219, 1
        %s803 = scalar_lea.sflag [#allocation4], %s802
        %s804 = sand.u32 %s219, 1
        %s805 = smul.addr %s804, 8
        %s806 = scalar_lea.vmem [#allocation5], %s805
        %s807 = smul.u32 2, %s37
        %p808 = scmp.lt.s32.totalorder %s38, 7
        %s809 = scalar_select %p808, %s38, 7
        %p810 = scmp.lt.s32.totalorder %s807, 1
        %s811 = scalar_select %p810, %s807, 1
        %s812 = smul.addr %s809, 2
        %s813 = sadd.s32 %s811, %s812
        %s814 = smul.addr %s813, 4
        %s815 = scalar_lea.vmem %s8, %s814
        %s816 = sand.u32 %s33, 1
        %s817 = scalar_lea.sflag [#allocation7], %s816
        %s818 = sand.u32 %s275, 1
        %s819 = smul.addr %s818, 8
        %s820 = scalar_lea.vmem [#allocation6], %s819
        %s821 = sand.u32 %s33, 1
        %s822 = scalar_lea.sflag [#allocation7], %s821
        %s823 = sand.u32 %s303, 1
        %s824 = smul.addr %s823, 16
        %s825 = scalar_lea.vmem [#allocation8], %s824
        %s826 = smul.u32 2, %s37
        %p827 = scmp.lt.s32.totalorder %s826, 1
        %s828 = scalar_select %p827, %s826, 1
        %s829 = smul.addr %s828, 8
        %s830 = scalar_lea.vmem %s11, %s829
        %s831 = smul.u32 2, %s37
        %p832 = scmp.lt.s32.totalorder %s831, 1
        %s833 = scalar_select %p832, %s831, 1
        %s834 = smul.addr %s833, 8
        %s835 = scalar_lea.vmem %s12, %s834
        // Predicated region
        $region57: #{tpu_custom_call.1} parent=47 // pred_check
          %p836 = pneg %p229
        $region58: #{tpu_custom_call.1} parent=47 // pred_check_branch
          %838 = sbr.rel (%p836) target = $region60
        $region59: #{tpu_custom_call.1} parent=47 // pred_region
          %s839 = smul.u32 2, %s37
          %s841 = ssub.s32 128, 128
          %842 = vsyncadd %s803, %s841
          %s843 = smul.addr %s38, 2
          %s844 = sadd.s32 %s839, %s843
          %s845 = smul.addr %s844, 64
          %s846 = scalar_lea.hbm %s7, %s845
          %s847 = sshll.u32 %s806, 4
          %s848 = int_to_ptr.vmem [resolvable:$true] %s847
          %853 = dma.vmem_to_hbm [thread:$0]  %s848, 128, %s846, %s803, 64, 64, 4
        $region60: #{tpu_custom_call.1} parent=47 // pred_fallthru
          _
        // Predicated region
        $region61: #{tpu_custom_call.1} parent=47 // pred_check
          %p854 = pneg %p257
        $region62: #{tpu_custom_call.1} parent=47 // pred_check_branch
          %856 = sbr.rel (%p854) target = $region64
        $region63: #{tpu_custom_call.1} parent=47 // pred_region
          %s857 = smul.u32 2, %s37
        $region64: #{tpu_custom_call.1} parent=47 // pred_fallthru
          _
        // Predicated region
        $region65: #{tpu_custom_call.1} parent=47 // pred_check
          %p858 = pneg %p285
        $region66: #{tpu_custom_call.1} parent=47 // pred_check_branch
          %860 = sbr.rel (%p858) target = $region68
        $region67: #{tpu_custom_call.1} parent=47 // pred_region
          %s861 = smul.u32 2, %s37
          %s863 = ssub.s32 128, 128
          %864 = vsyncadd %s817, %s863
          %s865 = smul.addr %s38, 2
          %s866 = sadd.s32 %s861, %s865
          %s867 = smul.addr %s866, 64
          %s868 = scalar_lea.hbm %s9, %s867
          %s869 = sshll.u32 %s820, 4
          %s870 = int_to_ptr.vmem [resolvable:$true] %s869
          %875 = dma.vmem_to_hbm [thread:$0]  %s870, 128, %s868, %s817, 64, 64, 4
        $region68: #{tpu_custom_call.1} parent=47 // pred_fallthru
          _
        // Predicated region
        $region69: #{tpu_custom_call.1} parent=47 // pred_check
          %p876 = pneg %p313
        $region70: #{tpu_custom_call.1} parent=47 // pred_check_branch
          %878 = sbr.rel (%p876) target = $region72
        $region71: #{tpu_custom_call.1} parent=47 // pred_region
          %s879 = smul.u32 2, %s37
          %s881 = ssub.s32 256, 256
          %882 = vsyncadd %s822, %s881
          %s883 = smul.addr %s38, 2
          %s884 = sadd.s32 %s879, %s883
          %s885 = smul.addr %s884, 128
          %s886 = scalar_lea.hbm %s10, %s885
          %s887 = sshll.u32 %s825, 4
          %s888 = int_to_ptr.vmem [resolvable:$true] %s887
          %893 = dma.vmem_to_hbm [thread:$0]  %s888, 256, %s886, %s822, 128, 128, 8
        $region72: #{tpu_custom_call.1} parent=47 // pred_fallthru
          _
        // Predicated region
        $region73: #{tpu_custom_call.1} parent=47 // pred_check
          %p894 = pneg %p339
        $region74: #{tpu_custom_call.1} parent=47 // pred_check_branch
          %896 = sbr.rel (%p894) target = $region76
        $region75: #{tpu_custom_call.1} parent=47 // pred_region
          %s897 = smul.u32 2, %s37
        $region76: #{tpu_custom_call.1} parent=47 // pred_fallthru
          _
        // Predicated region
        $region77: #{tpu_custom_call.1} parent=47 // pred_check
          %p898 = pneg %p365
        $region78: #{tpu_custom_call.1} parent=47 // pred_check_branch
          %900 = sbr.rel (%p898) target = $region80
        $region79: #{tpu_custom_call.1} parent=47 // pred_region
          %s901 = smul.u32 2, %s37
        $region80: #{tpu_custom_call.1} parent=47 // pred_fallthru
          _
        // Predicated region
        $region81: #{tpu_custom_call.1} parent=47 // pred_check
          %p902 = pneg %p339
        $region82: #{tpu_custom_call.1} parent=47 // pred_check_branch
          %904 = sbr.rel (%p902) target = $region84
        $region83: #{tpu_custom_call.1} parent=47 // pred_region
          %s905 = smul.u32 2, %s37
          %p906 = scmp.lt.s32.totalorder %s905, 1
          %s907 = scalar_select %p906, %s905, 1
          %s908 = smul.addr %s907, 8
          %s909 = scalar_lea.vmem %s11, %s908
        $region84: #{tpu_custom_call.1} parent=47 // pred_fallthru
          _
        // Predicated region
        $region85: #{tpu_custom_call.1} parent=47 // pred_check
          %p910 = pneg %p365
        $region86: #{tpu_custom_call.1} parent=47 // pred_check_branch
          %912 = sbr.rel (%p910) target = $region88
        $region87: #{tpu_custom_call.1} parent=47 // pred_region
          %s913 = smul.u32 2, %s37
          %p914 = scmp.lt.s32.totalorder %s913, 1
          %s915 = scalar_select %p914, %s913, 1
          %s916 = smul.addr %s915, 8
          %s917 = scalar_lea.vmem %s12, %s916
        $region88: #{tpu_custom_call.1} parent=47 // pred_fallthru
          _
      $region48: #{tpu_custom_call.1} parent=5 // pred_fallthru
        _
      %p918 = scmp.le.s32.totalorder 2, %s28
      // Predicated region
      $region89: #{tpu_custom_call.1} parent=5 // pred_check
        %p919 = pneg %p918
      $region90: #{tpu_custom_call.1} parent=5 // pred_check_branch
        %921 = sbr.rel (%p919) target = $region92
      $region91: #{tpu_custom_call.1} parent=5 // pred_region
        %s922 = ssub.s32 %s28, 2
        // Predicated region
        $region93: #{tpu_custom_call.1} parent=91 // pred_check
          %p923 = pneg %p235
        $region94: #{tpu_custom_call.1} parent=91 // pred_check_branch
          %925 = sbr.rel (%p923) target = $region96
        $region95: #{tpu_custom_call.1} parent=91 // pred_region
          %s926 = sand.u32 %s220, 1
          %s927 = scalar_lea.sflag [#allocation4], %s926
          %s928 = sand.u32 %s220, 1
          %s929 = smul.addr %s928, 8
          %s930 = scalar_lea.vmem [#allocation5], %s929
          %931 = dma.done %s927, 128
        $region96: #{tpu_custom_call.1} parent=91 // pred_fallthru
          _
        // Predicated region
        $region97: #{tpu_custom_call.1} parent=91 // pred_check
          %p932 = pneg %p263
        $region98: #{tpu_custom_call.1} parent=91 // pred_check_branch
          %934 = sbr.rel (%p932) target = $region100
        $region99: #{tpu_custom_call.1} parent=91 // pred_region
          %s935 = smul.u32 2, %s39
          %p936 = scmp.lt.s32.totalorder %s40, 7
          %s937 = scalar_select %p936, %s40, 7
          %p938 = scmp.lt.s32.totalorder %s935, 1
          %s939 = scalar_select %p938, %s935, 1
          %s940 = smul.addr %s937, 2
          %s941 = sadd.s32 %s939, %s940
          %s942 = smul.addr %s941, 4
          %s943 = scalar_lea.vmem %s8, %s942
        $region100: #{tpu_custom_call.1} parent=91 // pred_fallthru
          _
        // Predicated region
        $region101: #{tpu_custom_call.1} parent=91 // pred_check
          %p944 = pneg %p291
        $region102: #{tpu_custom_call.1} parent=91 // pred_check_branch
          %946 = sbr.rel (%p944) target = $region104
        $region103: #{tpu_custom_call.1} parent=91 // pred_region
          %s947 = sand.u32 %s34, 1
          %s948 = scalar_lea.sflag [#allocation7], %s947
          %s949 = sand.u32 %s276, 1
          %s950 = smul.addr %s949, 8
          %s951 = scalar_lea.vmem [#allocation6], %s950
          %952 = dma.done %s948, 128
        $region104: #{tpu_custom_call.1} parent=91 // pred_fallthru
          _
        // Predicated region
        $region105: #{tpu_custom_call.1} parent=91 // pred_check
          %p953 = pneg %p319
        $region106: #{tpu_custom_call.1} parent=91 // pred_check_branch
          %955 = sbr.rel (%p953) target = $region108
        $region107: #{tpu_custom_call.1} parent=91 // pred_region
          %s956 = sand.u32 %s34, 1
          %s957 = scalar_lea.sflag [#allocation7], %s956
          %s958 = sand.u32 %s304, 1
          %s959 = smul.addr %s958, 16
          %s960 = scalar_lea.vmem [#allocation8], %s959
          %961 = dma.done %s957, 256
        $region108: #{tpu_custom_call.1} parent=91 // pred_fallthru
          _
      $region92: #{tpu_custom_call.1} parent=5 // pred_fallthru
        _
    $region6: #{tpu_custom_call.1} parent=1 // loop_footer
      %s32 = sadd.s32 1, %s28
    $region7: #{tpu_custom_call.1} parent=1 // loop_footer_branch
      %27 = sbr.rel target = $region3
    $region8: #{tpu_custom_call.1} parent=1 // loop_exit
      _
    %962 = vsyncpa [#allocation3], 1
    %s963 = scalar_lea.sflag [#allocation3], 1
    %964 = vsyncpa %s963, 1
    %965 = vsyncpa [#allocation4], 1
    %s966 = scalar_lea.sflag [#allocation4], 1
    %967 = vsyncpa %s966, 1
    %968 = vsyncpa [#allocation7], 1
    %s969 = scalar_lea.sflag [#allocation7], 1
    %970 = vsyncpa %s969, 1

</llo_original>
